<compile_context>
chip_gen: v7x
topology: tpu7x:2x2x1
jax: 0.10.0
libtpu: 0.0.40
codegen_flags: <defaults>
</compile_context>

<pallas_src>
import functools

import jax
import jax.numpy as jnp
from jax.experimental import pallas as pl
from jax.experimental.pallas import tpu as pltpu


MXU_DTYPE = jnp.bfloat16   # MXU operand dtype (f32 accumulation everywhere)
ACC_DTYPE = jnp.float32


# ---------------------------------------------------------------------------
# Kernels: one grid step == (batch element, head)
# ---------------------------------------------------------------------------

def _attend_head_and_project(q, k, v, wo_h, bo_ref, out_ref, attw_ref):
    """One head: softmax(q k^T) v and its slice of the output projection.

    q: (T, Dh) f32 (1/sqrt(Dh) already folded into the Q weights)
    k, v: (S, Dh) f32;  wo_h: (Dh, E) bf16 (head h's rows of out_proj.weight.T)
    out_ref: (1, T, E) f32 block, resident across the head grid axis.
    attw_ref: (1, 1, T, S) f32 block, or None on the need_weights=False fast path.
    """
    h = pl.program_id(1)

    # scores: contract both operands on Dh (no in-kernel transpose / XLU pass).
    s = jax.lax.dot_general(
        q.astype(MXU_DTYPE), k.astype(MXU_DTYPE),
        (((1,), (1,)), ((), ())), preferred_element_type=ACC_DTYPE)       # (T, S)
    s = s - jnp.max(s, axis=-1, keepdims=True)
    p = jnp.exp(s)
    denom = jnp.sum(p, axis=-1, keepdims=True)
    if attw_ref is not None:
        # exact normalization so returned weights match F.softmax (parity).
        p = p / denom
        attw_ref[0, 0] = p
    else:
        # fast path: approx reciprocal runs on the otherwise-idle EUP slot.
        p = p * pl.reciprocal(denom, approx=True)

    ctx = jnp.dot(p.astype(MXU_DTYPE), v.astype(MXU_DTYPE),
                  preferred_element_type=ACC_DTYPE)                        # (T, Dh)
    # head h's contribution to the output projection (lane-dense (T, E) store).
    contrib = jnp.dot(ctx.astype(MXU_DTYPE), wo_h,
                      preferred_element_type=ACC_DTYPE)                    # (T, E)

    @pl.when(h == 0)
    def _init():
        out_ref[0] = contrib + bo_ref[...]          # bias broadcast over rows

    @pl.when(h != 0)
    def _accumulate():
        out_ref[0] = out_ref[0] + contrib


def _mha_self_kernel(x_ref, wqkv_ref, bqkv_ref, wo_ref, bo_ref,
                     out_ref, *attw_refs, head_dim):
    """Self-attention (qkv_same): single input slab, fused per-head QKV weights."""
    h = pl.program_id(1)
    x = x_ref[0]                                                    # (T, E) bf16
    qkv = jnp.dot(x, wqkv_ref[h],
                  preferred_element_type=ACC_DTYPE) + bqkv_ref[h]   # (T, 3*Dh)
    q = qkv[:, :head_dim]
    k = qkv[:, head_dim:2 * head_dim]
    v = qkv[:, 2 * head_dim:]
    attw_ref = attw_refs[0] if attw_refs else None
    _attend_head_and_project(q, k, v, wo_ref[h], bo_ref, out_ref, attw_ref)


def _mha_cross_kernel(xq_ref, xk_ref, xv_ref, wqkv_ref, bqkv_ref, wo_ref, bo_ref,
                      out_ref, *attw_refs, head_dim):
    """General path (query / key / value may be distinct arrays)."""
    h = pl.program_id(1)
    dh = head_dim
    w = wqkv_ref[h]                                                 # (E, 3*Dh) bf16
    b = bqkv_ref[h]                                                 # (1, 3*Dh) f32
    q = jnp.dot(xq_ref[0], w[:, :dh],
                preferred_element_type=ACC_DTYPE) + b[:, :dh]
    k = jnp.dot(xk_ref[0], w[:, dh:2 * dh],
                preferred_element_type=ACC_DTYPE) + b[:, dh:2 * dh]
    v = jnp.dot(xv_ref[0], w[:, 2 * dh:],
                preferred_element_type=ACC_DTYPE) + b[:, 2 * dh:]
    attw_ref = attw_refs[0] if attw_refs else None
    _attend_head_and_project(q, k, v, wo_ref[h], bo_ref, out_ref, attw_ref)


# ---------------------------------------------------------------------------
# Wrapper
# ---------------------------------------------------------------------------

def _vmem_limit_bytes(est_bytes):
    """Raise the scoped VMEM limit above the per-generation default while staying
    safely under physical capacity (64 MiB on v7x, 128 MiB on v5e/v6e)."""
    mib = 1024 * 1024
    try:
        cap = int(pltpu.get_tpu_info().vmem_capacity_bytes)
    except Exception:
        cap = 64 * mib                      # conservative: v7x per-core VMEM
    ceiling = min(cap - 8 * mib, 100 * mib)
    want = max(2 * est_bytes + 8 * mib, 32 * mib)
    return int(min(want, ceiling))


def multihead_attention(query, key, value, params, num_heads, need_weights=True):
    """query: (tgt_len, bsz, E); key/value: (src_len, bsz, E).

    Returns (attn (tgt_len, bsz, E), attn_weights (bsz*num_heads, tgt_len, src_len))
    like the PyTorch module; with need_weights=False only attn is returned (fast
    path that skips the O(H*T*S) attention-weights HBM write).
    """
    T, B, E = query.shape
    S = key.shape[0]
    assert key.shape == value.shape
    H = num_heads
    Dh = E // H
    assert Dh * H == E, "embed_dim must be divisible by num_heads"

    # analog of the PyTorch data_ptr() check: same array object => qkv_same.
    self_attn = (query is key) and (key is value)

    # layout plumbing only: (seq, bsz, E) -> (bsz, seq, E) lane-dense bf16 slabs.
    xq = jnp.transpose(query, (1, 0, 2)).astype(MXU_DTYPE)

    # weights are VMEM-resident across the whole grid (constant index_map).
    wqkv_spec = pl.BlockSpec((H, E, 3 * Dh), lambda b, h: (0, 0, 0))
    bqkv_spec = pl.BlockSpec((H, 1, 3 * Dh), lambda b, h: (0, 0, 0))
    wo_spec = pl.BlockSpec((H, Dh, E), lambda b, h: (0, 0, 0))
    bo_spec = pl.BlockSpec((1, E), lambda b, h: (0, 0))
    weight_args = (params["wqkv_h"], params["bqkv_h"], params["wo_h"], params["bo"])

    if self_attn:
        kern = functools.partial(_mha_self_kernel, head_dim=Dh)
        in_specs = [pl.BlockSpec((1, T, E), lambda b, h: (b, 0, 0)),
                    wqkv_spec, bqkv_spec, wo_spec, bo_spec]
        args = (xq,) + weight_args
    else:
        xk = jnp.transpose(key, (1, 0, 2)).astype(MXU_DTYPE)
        xv = xk if key is value else jnp.transpose(value, (1, 0, 2)).astype(MXU_DTYPE)
        kern = functools.partial(_mha_cross_kernel, head_dim=Dh)
        in_specs = [pl.BlockSpec((1, T, E), lambda b, h: (b, 0, 0)),
                    pl.BlockSpec((1, S, E), lambda b, h: (b, 0, 0)),
                    pl.BlockSpec((1, S, E), lambda b, h: (b, 0, 0)),
                    wqkv_spec, bqkv_spec, wo_spec, bo_spec]
        args = (xq, xk, xv) + weight_args

    out_shapes = [jax.ShapeDtypeStruct((B, T, E), jnp.float32)]
    out_specs = [pl.BlockSpec((1, T, E), lambda b, h: (b, 0, 0))]
    if need_weights:
        out_shapes.append(jax.ShapeDtypeStruct((B, H, T, S), jnp.float32))
        out_specs.append(pl.BlockSpec((1, 1, T, S), lambda b, h: (b, h, 0, 0)))

    itemsize = jnp.dtype(MXU_DTYPE).itemsize
    est = (4 * E * E * itemsize + 4 * E * 4                       # resident weights/biases
           + (2 if self_attn else 6) * max(T, S) * E * itemsize   # double-buffered slabs
           + 2 * T * E * 4                                        # output block
           + (2 * T * S * 4 if need_weights else 0))              # attn-weights block

    results = pl.pallas_call(
        kern,
        out_shape=tuple(out_shapes),
        grid=(B, H),
        in_specs=in_specs,
        out_specs=tuple(out_specs),
        compiler_params=pltpu.CompilerParams(
            dimension_semantics=("parallel", "arbitrary"),
            vmem_limit_bytes=_vmem_limit_bytes(est)),
    )(*args)

    attn = jnp.transpose(results[0], (1, 0, 2))                   # (T, B, E)
    if not need_weights:
        return attn
    attn_weights = results[1].reshape(B * H, T, S)                # b-major, h-minor
    return attn, attn_weights


# ---------------------------------------------------------------------------
# Parameters: PyTorch-style raw params + kernel-layout prep
# ---------------------------------------------------------------------------

def init_raw_params(key, embed_dim):
    """Matches MultiheadAttention.reset_parameters (normal std=0.02, zero bias)."""
    E = embed_dim
    k0, k1 = jax.random.split(key)
    return {
        "in_proj_weight": jax.random.normal(k0, (3 * E, E), jnp.float32) * 0.02,
        "in_proj_bias": jnp.zeros((3 * E,), jnp.float32),
        "out_proj_weight": jax.random.normal(k1, (E, E), jnp.float32) * 0.02,
        "out_proj_bias": jnp.zeros((E,), jnp.float32),
    }


def prepare_kernel_params(raw, embed_dim, num_heads):
    """PyTorch params -> kernel layout.

    * fused per-head QKV weight (H, E, 3*Dh) with columns [q_h | k_h | v_h];
      1/sqrt(head_dim) is folded into the q slice IN F32 before the bf16 cast.
    * per-head out_proj rows (H, Dh, E) so the output projection is accumulated
      head-by-head (no lane-partial context stores).
    """
    E, H = embed_dim, num_heads
    Dh = E // H
    scaling = float(Dh) ** -0.5
    W, b = raw["in_proj_weight"], raw["in_proj_bias"]

    def per_head_cols(w_t):          # (E_in, E_out) -> (H, E_in, Dh)
        return w_t.reshape(E, H, Dh).transpose(1, 0, 2)

    wq_t = W[:E].T * scaling
    wk_t = W[E:2 * E].T
    wv_t = W[2 * E:].T
    wqkv_h = jnp.concatenate(
        [per_head_cols(wq_t), per_head_cols(wk_t), per_head_cols(wv_t)], axis=-1)

    bq = (b[:E] * scaling).reshape(H, 1, Dh)
    bk = b[E:2 * E].reshape(H, 1, Dh)
    bv = b[2 * E:].reshape(H, 1, Dh)
    bqkv_h = jnp.concatenate([bq, bk, bv], axis=-1)

    wo_h = raw["out_proj_weight"].T.reshape(H, Dh, E)   # rows h*Dh:(h+1)*Dh -> head h

    return {
        "wqkv_h": wqkv_h.astype(MXU_DTYPE),
        "bqkv_h": bqkv_h.astype(jnp.float32),
        "wo_h": wo_h.astype(MXU_DTYPE),
        "bo": raw["out_proj_bias"].reshape(1, E).astype(jnp.float32),
    }


# ---------------------------------------------------------------------------
# Pure-JAX reference (mirrors the PyTorch forward) for correctness checking
# ---------------------------------------------------------------------------

def mha_reference(query, key, value, raw, num_heads):
    T, B, E = query.shape
    S = key.shape[0]
    H = num_heads
    Dh = E // H
    scaling = float(Dh) ** -0.5
    W, bias = raw["in_proj_weight"], raw["in_proj_bias"]
    q = query @ W[:E].T + bias[:E]
    k = key @ W[E:2 * E].T + bias[E:2 * E]
    v = value @ W[2 * E:].T + bias[2 * E:]
    q = q * scaling
    q = q.reshape(T, B * H, Dh).transpose(1, 0, 2)
    k = k.reshape(S, B * H, Dh).transpose(1, 0, 2)
    v = v.reshape(S, B * H, Dh).transpose(1, 0, 2)
    w = jax.nn.softmax(jnp.einsum("btd,bsd->bts", q, k), axis=-1)
    a = jnp.einsum("bts,bsd->btd", w, v)
    a = a.transpose(1, 0, 2).reshape(T, B, E)
    attn = a @ raw["out_proj_weight"].T + raw["out_proj_bias"]
    return attn, w


if __name__ == "__main__":
    embed_dim, num_heads = 32, 4
    tgt_len, src_len, bsz = 8, 16, 2

    root = jax.random.PRNGKey(0)
    x_key, kv_key, p_key = jax.random.split(root, 3)
    x = jax.random.normal(x_key, (tgt_len, bsz, embed_dim), jnp.float32)
    kv = jax.random.normal(kv_key, (src_len, bsz, embed_dim), jnp.float32)

    raw = init_raw_params(p_key, embed_dim)
    params = prepare_kernel_params(raw, embed_dim, num_heads)

    # --- self-attention (qkv_same branch), weights returned ---
    attn, attw = multihead_attention(x, x, x, params, num_heads)
    attn = jax.block_until_ready(attn)
    attw = jax.block_until_ready(attw)
    assert attn.shape == (tgt_len, bsz, embed_dim)
    assert attw.shape == (bsz * num_heads, tgt_len, tgt_len)
    assert bool(jnp.all(jnp.isfinite(attn))) and bool(jnp.all(jnp.isfinite(attw)))

    ref_attn, ref_w = mha_reference(x, x, x, raw, num_heads)
    assert bool(jnp.allclose(attn, ref_attn, rtol=2e-2, atol=5e-3)), "self attn mismatch"
    assert bool(jnp.allclose(attw, ref_w, rtol=2e-2, atol=5e-3)), "self attn_weights mismatch"

    # --- need_weights=False fast path (no (B,H,T,S) HBM write) ---
    attn_fast = multihead_attention(x, x, x, params, num_heads, need_weights=False)
    attn_fast = jax.block_until_ready(attn_fast)
    assert bool(jnp.allclose(attn_fast, ref_attn, rtol=2e-2, atol=5e-3)), "fast path mismatch"

    # --- cross attention (kv_same branch), src_len != tgt_len ---
    attn_c, attw_c = multihead_attention(x, kv, kv, params, num_heads)
    attn_c = jax.block_until_ready(attn_c)
    attw_c = jax.block_until_ready(attw_c)
    assert attn_c.shape == (tgt_len, bsz, embed_dim)
    assert attw_c.shape == (bsz * num_heads, tgt_len, src_len)
    ref_attn_c, ref_w_c = mha_reference(x, kv, kv, raw, num_heads)
    assert bool(jnp.allclose(attn_c, ref_attn_c, rtol=2e-2, atol=5e-3)), "cross attn mismatch"
    assert bool(jnp.allclose(attw_c, ref_w_c, rtol=2e-2, atol=5e-3)), "cross attn_weights mismatch"

    print("KERNEL_OK")
</pallas_src>

<mosaic_0001>
module attributes {stable_mosaic.version = 11 : i64} {
  func.func @_mha_self_kernel(%arg0: i32, %arg1: i32, %arg2: memref<1x8x32xbf16, #tpu.memory_space<vmem>>, %arg3: memref<4x32x24xbf16, #tpu.memory_space<vmem>>, %arg4: memref<4x1x24xf32, #tpu.memory_space<vmem>>, %arg5: memref<4x8x32xbf16, #tpu.memory_space<vmem>>, %arg6: memref<1x32xf32, #tpu.memory_space<vmem>>, %arg7: memref<1x8x32xf32, #tpu.memory_space<vmem>>, %arg8: memref<1x1x8x8xf32, #tpu.memory_space<vmem>>) attributes {dimension_semantics = [#tpu.dimension_semantics<parallel>, #tpu.dimension_semantics<arbitrary>], iteration_bounds = array<i64: 2, 4>, scalar_prefetch = 0 : i64, scratch_operands = 0 : i64, tpu.core_type = #tpu.core_type<tc>, window_params = [{transform_indices = @transform_0, window_bounds = array<i64: 1, 8, 32>}, {pipeline_mode = #tpu.pipeline_mode<synchronous>, transform_indices = @transform_1, window_bounds = array<i64: 4, 32, 24>}, {pipeline_mode = #tpu.pipeline_mode<synchronous>, transform_indices = @transform_2, window_bounds = array<i64: 4, 1, 24>}, {pipeline_mode = #tpu.pipeline_mode<synchronous>, transform_indices = @transform_3, window_bounds = array<i64: 4, 8, 32>}, {pipeline_mode = #tpu.pipeline_mode<synchronous>, transform_indices = @transform_4, window_bounds = array<i64: 1, 32>}, {transform_indices = @transform_5, window_bounds = array<i64: 1, 8, 32>}, {transform_indices = @transform_6, window_bounds = array<i64: 1, 1, 8, 8>}]} {
    %c0 = arith.constant 0 : index
    %c0_0 = arith.constant 0 : index
    %c0_1 = arith.constant 0 : index
    %0 = vector.load %arg2[%c0, %c0_0, %c0_1] : memref<1x8x32xbf16, #tpu.memory_space<vmem>>, vector<1x8x32xbf16>
    %1 = vector.shape_cast %0 : vector<1x8x32xbf16> to vector<8x32xbf16>
    %2 = arith.index_cast %arg1 : i32 to index
    %c0_2 = arith.constant 0 : index
    %c0_3 = arith.constant 0 : index
    %3 = vector.load %arg3[%2, %c0_2, %c0_3] : memref<4x32x24xbf16, #tpu.memory_space<vmem>>, vector<1x32x24xbf16>
    %4 = vector.shape_cast %3 : vector<1x32x24xbf16> to vector<32x24xbf16>
    %cst = arith.constant dense<0.000000e+00> : vector<8x24xf32>
    %5 = tpu.matmul %1, %4, %cst {dimension_numbers = #tpu.dot_dimension_numbers<[1], [0], [0], [1], [0, 0, 1, 1], [], []>} : vector<8x32xbf16>, vector<32x24xbf16>, vector<8x24xf32> -> vector<8x24xf32>
    %6 = arith.index_cast %arg1 : i32 to index
    %c0_4 = arith.constant 0 : index
    %c0_5 = arith.constant 0 : index
    %7 = vector.load %arg4[%6, %c0_4, %c0_5] : memref<4x1x24xf32, #tpu.memory_space<vmem>>, vector<1x1x24xf32>
    %8 = vector.shape_cast %7 : vector<1x1x24xf32> to vector<1x24xf32>
    %9 = vector.broadcast %8 : vector<1x24xf32> to vector<8x24xf32>
    %10 = arith.addf %5, %9 : vector<8x24xf32>
    %11 = vector.extract_strided_slice %10 {offsets = [0, 0], sizes = [8, 8], strides = [1, 1]} : vector<8x24xf32> to vector<8x8xf32>
    %12 = vector.extract_strided_slice %10 {offsets = [0, 8], sizes = [8, 8], strides = [1, 1]} : vector<8x24xf32> to vector<8x8xf32>
    %13 = vector.extract_strided_slice %10 {offsets = [0, 16], sizes = [8, 8], strides = [1, 1]} : vector<8x24xf32> to vector<8x8xf32>
    %14 = arith.index_cast %arg1 : i32 to index
    %c0_6 = arith.constant 0 : index
    %c0_7 = arith.constant 0 : index
    %15 = vector.load %arg5[%14, %c0_6, %c0_7] : memref<4x8x32xbf16, #tpu.memory_space<vmem>>, vector<1x8x32xbf16>
    %16 = vector.shape_cast %15 : vector<1x8x32xbf16> to vector<8x32xbf16>
    %17 = arith.truncf %11 : vector<8x8xf32> to vector<8x8xbf16>
    %18 = arith.truncf %12 : vector<8x8xf32> to vector<8x8xbf16>
    %cst_8 = arith.constant dense<0.000000e+00> : vector<8x8xf32>
    %19 = tpu.matmul %17, %18, %cst_8 {dimension_numbers = #tpu.dot_dimension_numbers<[1], [1], [0], [0], [0, 0, 1, 0], [], []>} : vector<8x8xbf16>, vector<8x8xbf16>, vector<8x8xf32> -> vector<8x8xf32>
    %cst_9 = arith.constant dense<0xFF800000> : vector<8xf32>
    %20 = vector.multi_reduction <maximumf>, %19, %cst_9 [1] : vector<8x8xf32> to vector<8xf32>
    %21 = vector.shape_cast %20 : vector<8xf32> to vector<8x1xf32>
    %22 = vector.broadcast %21 : vector<8x1xf32> to vector<8x8xf32>
    %23 = arith.subf %19, %22 : vector<8x8xf32>
    %24 = math.exp %23 : vector<8x8xf32>
    %cst_10 = arith.constant dense<0.000000e+00> : vector<8xf32>
    %25 = vector.multi_reduction <add>, %24, %cst_10 [1] : vector<8x8xf32> to vector<8xf32>
    %26 = vector.shape_cast %25 : vector<8xf32> to vector<8x1xf32>
    %27 = vector.broadcast %26 : vector<8x1xf32> to vector<8x8xf32>
    %28 = arith.divf %24, %27 : vector<8x8xf32>
    %c0_11 = arith.constant 0 : index
    %c0_12 = arith.constant 0 : index
    %c0_13 = arith.constant 0 : index
    %c0_14 = arith.constant 0 : index
    %29 = vector.load %arg8[%c0_11, %c0_12, %c0_13, %c0_14] : memref<1x1x8x8xf32, #tpu.memory_space<vmem>>, vector<1x1x8x8xf32>
    %30 = vector.shape_cast %29 : vector<1x1x8x8xf32> to vector<8x8xf32>
    %31 = vector.shape_cast %28 : vector<8x8xf32> to vector<1x1x8x8xf32>
    tpu.vector_store %arg8[%c0_11, %c0_12, %c0_13, %c0_14], %31 {strides = array<i32>} : memref<1x1x8x8xf32, #tpu.memory_space<vmem>>, vector<1x1x8x8xf32>,
    %32 = arith.truncf %28 : vector<8x8xf32> to vector<8x8xbf16>
    %33 = arith.truncf %13 : vector<8x8xf32> to vector<8x8xbf16>
    %cst_15 = arith.constant dense<0.000000e+00> : vector<8x8xf32>
    %34 = tpu.matmul %32, %33, %cst_15 {dimension_numbers = #tpu.dot_dimension_numbers<[1], [0], [0], [1], [0, 0, 1, 1], [], []>} : vector<8x8xbf16>, vector<8x8xbf16>, vector<8x8xf32> -> vector<8x8xf32>
    %35 = arith.truncf %34 : vector<8x8xf32> to vector<8x8xbf16>
    %cst_16 = arith.constant dense<0.000000e+00> : vector<8x32xf32>
    %36 = tpu.matmul %35, %16, %cst_16 {dimension_numbers = #tpu.dot_dimension_numbers<[1], [0], [0], [1], [0, 0, 1, 1], [], []>} : vector<8x8xbf16>, vector<8x32xbf16>, vector<8x32xf32> -> vector<8x32xf32>
    %c0_i32 = arith.constant 0 : i32
    %37 = arith.cmpi eq, %arg1, %c0_i32 : i32
    %38 = arith.extui %37 : i1 to i32
    %c0_i32_17 = arith.constant 0 : i32
    %39 = arith.cmpi ne, %38, %c0_i32_17 : i32
    scf.if %39 {
      %c0_20 = arith.constant 0 : index
      %c0_21 = arith.constant 0 : index
      %43 = vector.load %arg6[%c0_20, %c0_21] : memref<1x32xf32, #tpu.memory_space<vmem>>, vector<1x32xf32>
      %44 = vector.broadcast %43 : vector<1x32xf32> to vector<8x32xf32>
      %45 = arith.addf %36, %44 : vector<8x32xf32>
      %c0_22 = arith.constant 0 : index
      %c0_23 = arith.constant 0 : index
      %c0_24 = arith.constant 0 : index
      %46 = vector.load %arg7[%c0_22, %c0_23, %c0_24] : memref<1x8x32xf32, #tpu.memory_space<vmem>>, vector<1x8x32xf32>
      %47 = vector.shape_cast %46 : vector<1x8x32xf32> to vector<8x32xf32>
      %48 = vector.shape_cast %45 : vector<8x32xf32> to vector<1x8x32xf32>
      tpu.vector_store %arg7[%c0_22, %c0_23, %c0_24], %48 {strides = array<i32>} : memref<1x8x32xf32, #tpu.memory_space<vmem>>, vector<1x8x32xf32>,
    } else {
    }
    %c0_i32_18 = arith.constant 0 : i32
    %40 = arith.cmpi ne, %arg1, %c0_i32_18 : i32
    %41 = arith.extui %40 : i1 to i32
    %c0_i32_19 = arith.constant 0 : i32
    %42 = arith.cmpi ne, %41, %c0_i32_19 : i32
    scf.if %42 {
      %c0_20 = arith.constant 0 : index
      %c0_21 = arith.constant 0 : index
      %c0_22 = arith.constant 0 : index
      %43 = vector.load %arg7[%c0_20, %c0_21, %c0_22] : memref<1x8x32xf32, #tpu.memory_space<vmem>>, vector<1x8x32xf32>
      %44 = vector.shape_cast %43 : vector<1x8x32xf32> to vector<8x32xf32>
      %45 = arith.addf %44, %36 : vector<8x32xf32>
      %c0_23 = arith.constant 0 : index
      %c0_24 = arith.constant 0 : index
      %c0_25 = arith.constant 0 : index
      %46 = vector.load %arg7[%c0_23, %c0_24, %c0_25] : memref<1x8x32xf32, #tpu.memory_space<vmem>>, vector<1x8x32xf32>
      %47 = vector.shape_cast %46 : vector<1x8x32xf32> to vector<8x32xf32>
      %48 = vector.shape_cast %45 : vector<8x32xf32> to vector<1x8x32xf32>
      tpu.vector_store %arg7[%c0_23, %c0_24, %c0_25], %48 {strides = array<i32>} : memref<1x8x32xf32, #tpu.memory_space<vmem>>, vector<1x8x32xf32>,
    } else {
    }
    return
  }
  func.func @transform_0(%arg0: i32, %arg1: i32) -> (i32, i32, i32) {
    %c0_i32 = arith.constant 0 : i32
    %c0_i32_0 = arith.constant 0 : i32
    %c0_i32_1 = arith.constant 0 : i32
    return %arg0, %c0_i32, %c0_i32_0 : i32, i32, i32
  }
  func.func @transform_1(%arg0: i32, %arg1: i32) -> (i32, i32, i32) {
    %c0_i32 = arith.constant 0 : i32
    %c0_i32_0 = arith.constant 0 : i32
    %c0_i32_1 = arith.constant 0 : i32
    %c0_i32_2 = arith.constant 0 : i32
    return %c0_i32, %c0_i32_0, %c0_i32_1 : i32, i32, i32
  }
  func.func @transform_2(%arg0: i32, %arg1: i32) -> (i32, i32, i32) {
    %c0_i32 = arith.constant 0 : i32
    %c0_i32_0 = arith.constant 0 : i32
    %c0_i32_1 = arith.constant 0 : i32
    %c0_i32_2 = arith.constant 0 : i32
    return %c0_i32, %c0_i32_0, %c0_i32_1 : i32, i32, i32
  }
  func.func @transform_3(%arg0: i32, %arg1: i32) -> (i32, i32, i32) {
    %c0_i32 = arith.constant 0 : i32
    %c0_i32_0 = arith.constant 0 : i32
    %c0_i32_1 = arith.constant 0 : i32
    %c0_i32_2 = arith.constant 0 : i32
    return %c0_i32, %c0_i32_0, %c0_i32_1 : i32, i32, i32
  }
  func.func @transform_4(%arg0: i32, %arg1: i32) -> (i32, i32) {
    %c0_i32 = arith.constant 0 : i32
    %c0_i32_0 = arith.constant 0 : i32
    %c0_i32_1 = arith.constant 0 : i32
    return %c0_i32, %c0_i32_0 : i32, i32
  }
  func.func @transform_5(%arg0: i32, %arg1: i32) -> (i32, i32, i32) {
    %c0_i32 = arith.constant 0 : i32
    %c0_i32_0 = arith.constant 0 : i32
    %c0_i32_1 = arith.constant 0 : i32
    return %arg0, %c0_i32, %c0_i32_0 : i32, i32, i32
  }
  func.func @transform_6(%arg0: i32, %arg1: i32) -> (i32, i32, i32, i32) {
    %c0_i32 = arith.constant 0 : i32
    %c0_i32_0 = arith.constant 0 : i32
    %c0_i32_1 = arith.constant 0 : i32
    return %arg0, %arg1, %c0_i32, %c0_i32_0 : i32, i32, i32, i32
  }
}

</mosaic_0001>

<llo_original>
// kernel: tpu_custom_call.1
$region0: #{tpu_custom_call.1}
  #allocation0 [shape = 'u32[]', space=smem, size = 0x4, offset = 0x4, fixed_abs, tag = 'smem constant byte address 0x4 - core index']
  #allocation1 [shape = 'u32[144,128]{1,0:T(1,128)}', space=vmem, size = 0x12000, scoped, tag = 'internal scratch']
  %s0 = inlined_call_operand.vmem [shape: bf16[2,8,32], index: 0, kind: input, shape index: {}]
  %s1 = inlined_call_operand.vmem [shape: bf16[4,32,24], index: 1, kind: input, shape index: {}]
  %s2 = inlined_call_operand.vmem [shape: f32[4,1,24], index: 2, kind: input, shape index: {}]
  %s3 = inlined_call_operand.vmem [shape: bf16[4,8,32], index: 3, kind: input, shape index: {}]
  %s4 = inlined_call_operand.vmem [shape: f32[1,32], index: 4, kind: input, shape index: {}]
  %s5 = inlined_call_operand.hbm [shape: f32[2,8,32], index: 5, kind: output, shape index: {0}]
  %s6 = inlined_call_operand.hbm [shape: f32[2,4,8,8], index: 6, kind: output, shape index: {1}]
  %7 = xla_tuple %s5, %s6
  %s8 = sld [smem:[#allocation0]]
  $region69: #{tpu_custom_call.1} parent=0
    _
  %s10 = ssub.s32 1, %s8
  %s11 = scalar_select 0, %s10, %s8
  $region1: #{tpu_custom_call.1} parent=0
    #allocation2 [shape = 'u8[8192]{0}', space=vmem, size = 0x2000, scoped, tag = 'output window, operand 0']
    #allocation3 [shape = 's32[2]{0}', space=sflag, size = 0x8, scoped, tag = 'scoped memory for tpu_custom_call.1']
    #allocation4 [shape = 'u8[8192]{0}', space=vmem, size = 0x2000, scoped, tag = 'output window, operand 1']
    #allocation5 [shape = 's32[2]{0}', space=sflag, size = 0x8, scoped, tag = 'scoped memory for tpu_custom_call.1']
    %12 = vsyncpa [#allocation3], 0
    %s13 = scalar_lea.sflag [#allocation3], 1
    %14 = vsyncpa %s13, 0
    %15 = vsyncpa [#allocation5], 0
    %s16 = scalar_lea.sflag [#allocation5], 1
    %17 = vsyncpa %s16, 0
    loop: start=0, step=1, limit=10
    $region2: #{tpu_custom_call.1} parent=1 // loop_pre_header
      _
    $region3: #{tpu_custom_call.1} parent=1 // loop_header
      %s19 = sphi 0, %s23
      %p20 = scmp.ge.s32.totalorder %s19, 10
      %s26 = sphi 0, %s38
      %s27 = sphi 0, %s34
      %s28 = sphi 0, %s26
      %s29 = sphi 0, %s27
      %s30 = sphi 0, %s28
      %s31 = sphi 0, %s29
      %s41 = sphi 0, %s43
      %s44 = sphi 0, %s41
      %s45 = sphi 0, %s44
      %s61 = sphi 0, %s45
      %s65 = sphi 0, %s65
      %s67 = sphi 0, %s65
      %s68 = sphi 0, %s67
      %s82 = sphi 0, %s68
      %s86 = sphi 0, %s86
      %s88 = sphi 0, %s86
      %s89 = sphi 0, %s88
      %s103 = sphi 0, %s89
      %s107 = sphi 0, %s107
      %s109 = sphi 0, %s107
      %s110 = sphi 0, %s109
      %s124 = sphi 0, %s110
      %s128 = sphi 0, %s128
      %s130 = sphi 0, %s128
      %s131 = sphi 0, %s130
      %s145 = sphi 0, %s131
      %s151 = sphi 0, %s153
      %s154 = sphi 0, %s151
      %s155 = sphi 0, %s154
      %s171 = sphi 0, %s155
      %s179 = sphi 0, %s181
      %s182 = sphi 0, %s179
      %s183 = sphi 0, %s182
      %s199 = sphi 0, %s183
    $region4: #{tpu_custom_call.1} parent=1 // loop_header_branch
      %22 = sbr.rel (%p20) target = $region8
    $region5: #{tpu_custom_call.1} parent=1 // loop_body
      %s24 = ssub.s32 %s19, 1
      %s25 = ssub.s32 %s19, 2
      %s32 = sadd.s32 1, %s27
      %p33 = scmp.ge.s32.totalorder %s32, 4
      %s34 = scalar_select %p33, 0, %s32
      %s35 = sadd.s32 1, %s26
      %s36 = scalar_select %p33, %s35, %s26
      %p37 = scmp.ge.s32.totalorder %s36, 2
      %s38 = scalar_select %p37, 0, %s36
      %s39 = ssub.s32 %s26, %s38
      %p40 = scmp.eq.s32.totalorder %s39, 0
      %s42 = sadd.s32 %s41, 1
      %s43 = scalar_select %p40, %s41, %s42
      %p46 = pneg %p40
      %p47 = scmp.eq.s32.totalorder %s19, 7
      %p48 = por %p46, %p47
      %p49 = scmp.ne.s32.totalorder %s41, %s44
      %p50 = scmp.eq.s32.totalorder %s19, 0
      %p51 = por %p49, %p50
      %p52 = scmp.ne.s32.totalorder %s41, %s44
      %p53 = scmp.eq.s32.totalorder %s24, 7
      %p54 = por %p52, %p53
      %p55 = scmp.ne.s32.totalorder %s44, %s45
      %p56 = scmp.eq.s32.totalorder %s24, 0
      %p57 = por %p55, %p56
      %p58 = scmp.ne.s32.totalorder %s44, %s45
      %p59 = scmp.eq.s32.totalorder %s25, 7
      %p60 = por %p58, %p59
      %p62 = scmp.ne.s32.totalorder %s45, %s61
      %p63 = scmp.eq.s32.totalorder %s25, 0
      %p64 = por %p62, %p63
      %s66 = sadd.s32 %s65, 1
      %p69 = scmp.eq.s32.totalorder %s19, 7
      %p70 = scmp.ne.s32.totalorder %s65, %s67
      %p71 = scmp.eq.s32.totalorder %s19, 0
      %p72 = por %p70, %p71
      %p73 = scmp.ne.s32.totalorder %s65, %s67
      %p74 = scmp.eq.s32.totalorder %s24, 7
      %p75 = por %p73, %p74
      %p76 = scmp.ne.s32.totalorder %s67, %s68
      %p77 = scmp.eq.s32.totalorder %s24, 0
      %p78 = por %p76, %p77
      %p79 = scmp.ne.s32.totalorder %s67, %s68
      %p80 = scmp.eq.s32.totalorder %s25, 7
      %p81 = por %p79, %p80
      %p83 = scmp.ne.s32.totalorder %s68, %s82
      %p84 = scmp.eq.s32.totalorder %s25, 0
      %p85 = por %p83, %p84
      %s87 = sadd.s32 %s86, 1
      %p90 = scmp.eq.s32.totalorder %s19, 7
      %p91 = scmp.ne.s32.totalorder %s86, %s88
      %p92 = scmp.eq.s32.totalorder %s19, 0
      %p93 = por %p91, %p92
      %p94 = scmp.ne.s32.totalorder %s86, %s88
      %p95 = scmp.eq.s32.totalorder %s24, 7
      %p96 = por %p94, %p95
      %p97 = scmp.ne.s32.totalorder %s88, %s89
      %p98 = scmp.eq.s32.totalorder %s24, 0
      %p99 = por %p97, %p98
      %p100 = scmp.ne.s32.totalorder %s88, %s89
      %p101 = scmp.eq.s32.totalorder %s25, 7
      %p102 = por %p100, %p101
      %p104 = scmp.ne.s32.totalorder %s89, %s103
      %p105 = scmp.eq.s32.totalorder %s25, 0
      %p106 = por %p104, %p105
      %s108 = sadd.s32 %s107, 1
      %p111 = scmp.eq.s32.totalorder %s19, 7
      %p112 = scmp.ne.s32.totalorder %s107, %s109
      %p113 = scmp.eq.s32.totalorder %s19, 0
      %p114 = por %p112, %p113
      %p115 = scmp.ne.s32.totalorder %s107, %s109
      %p116 = scmp.eq.s32.totalorder %s24, 7
      %p117 = por %p115, %p116
      %p118 = scmp.ne.s32.totalorder %s109, %s110
      %p119 = scmp.eq.s32.totalorder %s24, 0
      %p120 = por %p118, %p119
      %p121 = scmp.ne.s32.totalorder %s109, %s110
      %p122 = scmp.eq.s32.totalorder %s25, 7
      %p123 = por %p121, %p122
      %p125 = scmp.ne.s32.totalorder %s110, %s124
      %p126 = scmp.eq.s32.totalorder %s25, 0
      %p127 = por %p125, %p126
      %s129 = sadd.s32 %s128, 1
      %p132 = scmp.eq.s32.totalorder %s19, 7
      %p133 = scmp.ne.s32.totalorder %s128, %s130
      %p134 = scmp.eq.s32.totalorder %s19, 0
      %p135 = por %p133, %p134
      %p136 = scmp.ne.s32.totalorder %s128, %s130
      %p137 = scmp.eq.s32.totalorder %s24, 7
      %p138 = por %p136, %p137
      %p139 = scmp.ne.s32.totalorder %s130, %s131
      %p140 = scmp.eq.s32.totalorder %s24, 0
      %p141 = por %p139, %p140
      %p142 = scmp.ne.s32.totalorder %s130, %s131
      %p143 = scmp.eq.s32.totalorder %s25, 7
      %p144 = por %p142, %p143
      %p146 = scmp.ne.s32.totalorder %s131, %s145
      %p147 = scmp.eq.s32.totalorder %s25, 0
      %p148 = por %p146, %p147
      %s149 = ssub.s32 %s26, %s38
      %p150 = scmp.eq.s32.totalorder %s149, 0
      %s152 = sadd.s32 %s151, 1
      %s153 = scalar_select %p150, %s151, %s152
      %p156 = pneg %p150
      %p157 = scmp.eq.s32.totalorder %s19, 7
      %p158 = por %p156, %p157
      %p159 = scmp.ne.s32.totalorder %s151, %s154
      %p160 = scmp.eq.s32.totalorder %s19, 0
      %p161 = por %p159, %p160
      %p162 = scmp.ne.s32.totalorder %s151, %s154
      %p163 = scmp.eq.s32.totalorder %s24, 7
      %p164 = por %p162, %p163
      %p165 = scmp.ne.s32.totalorder %s154, %s155
      %p166 = scmp.eq.s32.totalorder %s24, 0
      %p167 = por %p165, %p166
      %p168 = scmp.ne.s32.totalorder %s154, %s155
      %p169 = scmp.eq.s32.totalorder %s25, 7
      %p170 = por %p168, %p169
      %p172 = scmp.ne.s32.totalorder %s155, %s171
      %p173 = scmp.eq.s32.totalorder %s25, 0
      %p174 = por %p172, %p173
      %s175 = ssub.s32 %s26, %s38
      %s176 = ssub.s32 %s27, %s34
      %s177 = sor.u32 %s175, %s176
      %p178 = scmp.eq.s32.totalorder %s177, 0
      %s180 = sadd.s32 %s179, 1
      %s181 = scalar_select %p178, %s179, %s180
      %p184 = pneg %p178
      %p185 = scmp.eq.s32.totalorder %s19, 7
      %p186 = por %p184, %p185
      %p187 = scmp.ne.s32.totalorder %s179, %s182
      %p188 = scmp.eq.s32.totalorder %s19, 0
      %p189 = por %p187, %p188
      %p190 = scmp.ne.s32.totalorder %s179, %s182
      %p191 = scmp.eq.s32.totalorder %s24, 7
      %p192 = por %p190, %p191
      %p193 = scmp.ne.s32.totalorder %s182, %s183
      %p194 = scmp.eq.s32.totalorder %s24, 0
      %p195 = por %p193, %p194
      %p196 = scmp.ne.s32.totalorder %s182, %s183
      %p197 = scmp.eq.s32.totalorder %s25, 7
      %p198 = por %p196, %p197
      %p200 = scmp.ne.s32.totalorder %s183, %s199
      %p201 = scmp.eq.s32.totalorder %s25, 0
      %p202 = por %p200, %p201
      %p203 = scmp.le.s32.totalorder 1, %s19
      %p204 = scmp.lt.s32.totalorder %s19, 9
      %p205 = pnand %p203, %p204
      %p206 = pneg %p205
      // Predicated region
      $region9: #{tpu_custom_call.1} parent=5 // pred_check
        _
      $region10: #{tpu_custom_call.1} parent=5 // pred_check_branch
        %208 = sbr.rel (%p205) target = $region12
      $region11: #{tpu_custom_call.1} parent=5 // pred_region
        %s209 = ssub.s32 %s19, 1
        // Predicated region
        $region13: #{tpu_custom_call.1} parent=11 // pred_check
          %p210 = pneg %p78
        $region14: #{tpu_custom_call.1} parent=11 // pred_check_branch
          %212 = sbr.rel (%p210) target = $region16
        $region15: #{tpu_custom_call.1} parent=11 // pred_region
          _
        $region16: #{tpu_custom_call.1} parent=11 // pred_fallthru
          _
        // Predicated region
        $region17: #{tpu_custom_call.1} parent=11 // pred_check
          %p213 = pneg %p99
        $region18: #{tpu_custom_call.1} parent=11 // pred_check_branch
          %215 = sbr.rel (%p213) target = $region20
        $region19: #{tpu_custom_call.1} parent=11 // pred_region
          _
        $region20: #{tpu_custom_call.1} parent=11 // pred_fallthru
          _
        // Predicated region
        $region21: #{tpu_custom_call.1} parent=11 // pred_check
          %p216 = pneg %p120
        $region22: #{tpu_custom_call.1} parent=11 // pred_check_branch
          %218 = sbr.rel (%p216) target = $region24
        $region23: #{tpu_custom_call.1} parent=11 // pred_region
          _
        $region24: #{tpu_custom_call.1} parent=11 // pred_fallthru
          _
        // Predicated region
        $region25: #{tpu_custom_call.1} parent=11 // pred_check
          %p219 = pneg %p141
        $region26: #{tpu_custom_call.1} parent=11 // pred_check_branch
          %221 = sbr.rel (%p219) target = $region28
        $region27: #{tpu_custom_call.1} parent=11 // pred_region
          _
        $region28: #{tpu_custom_call.1} parent=11 // pred_fallthru
          _
      $region12: #{tpu_custom_call.1} parent=5 // pred_fallthru
        _
      %p222 = scmp.lt.s32.totalorder %s19, 8
      // Predicated region
      $region29: #{tpu_custom_call.1} parent=5 // pred_check
        %p223 = pneg %p222
      $region30: #{tpu_custom_call.1} parent=5 // pred_check_branch
        %225 = sbr.rel (%p223) target = $region32
      $region31: #{tpu_custom_call.1} parent=5 // pred_region
        // Predicated region
        $region33: #{tpu_custom_call.1} parent=31 // pred_check
          %p226 = pneg %p51
        $region34: #{tpu_custom_call.1} parent=31 // pred_check_branch
          %228 = sbr.rel (%p226) target = $region36
        $region35: #{tpu_custom_call.1} parent=31 // pred_region
          %p229 = scmp.lt.s32.totalorder %s26, 1
          %s230 = scalar_select %p229, %s26, 1
          %s231 = smul.addr %s230, 4
          %s232 = scalar_lea.vmem %s0, %s231
        $region36: #{tpu_custom_call.1} parent=31 // pred_fallthru
          _
      $region32: #{tpu_custom_call.1} parent=5 // pred_fallthru
        _
      %p233 = scmp.le.s32.totalorder 1, %s19
      %p234 = scmp.lt.s32.totalorder %s19, 9
      %p235 = pnand %p233, %p234
      %p236 = pneg %p235
      // Predicated region
      $region37: #{tpu_custom_call.1} parent=5 // pred_check
        _
      $region38: #{tpu_custom_call.1} parent=5 // pred_check_branch
        %238 = sbr.rel (%p235) target = $region40
      $region39: #{tpu_custom_call.1} parent=5 // pred_region
        %s239 = ssub.s32 %s19, 1
        %p240 = scmp.lt.s32.totalorder %s28, 1
        %s241 = scalar_select %p240, %s28, 1
        %s242 = smul.addr %s241, 4
        %s243 = scalar_lea.vmem %s0, %s242
        %p244 = pneg %p57
        %p245 = pneg %p54
        %p246 = pneg %p78
        %p247 = pneg %p75
        %p248 = pneg %p99
        %p249 = pneg %p96
        %p250 = pneg %p120
        %p251 = pneg %p117
        %p252 = pneg %p141
        %p253 = pneg %p138
        %p254 = pneg %p167
        %p255 = pneg %p164
        %s256 = sand.u32 %s154, 1
        %s257 = scalar_lea.sflag [#allocation3], %s256
        %s258 = sand.u32 %s154, 1
        %s259 = smul.addr %s258, 8
        %s260 = scalar_lea.vmem [#allocation2], %s259
        %p261 = pneg %p195
        %p262 = pneg %p192
        %s263 = sand.u32 %s182, 1
        %s264 = scalar_lea.sflag [#allocation5], %s263
        %s265 = sand.u32 %s182, 1
        %s266 = smul.addr %s265, 8
        %s267 = scalar_lea.vmem [#allocation4], %s266
        %p268 = scmp.lt.s32.totalorder %s28, 1
        %s269 = scalar_select %p268, %s28, 1
        %s270 = smul.addr %s269, 4
        %s271 = scalar_lea.vmem %s0, %s270
        %v273 = vld [vmem:[%s271] sm:$0xf]
        %s274 = smul.u32 %s29, 4
        %s275 = smul.addr %s274, 4
        %s276 = scalar_lea.vmem %s1, %s275
        %v277 = vld [vmem:[%s276] sm:$0xf]
        %v278 = vld [vmem:[%s276 + $0x4] sm:$0xf]
        %v279 = vld [vmem:[%s276 + $0x8] sm:$0xf]
        %v280 = vld [vmem:[%s276 + $0xc] sm:$0xf]
        %s281 = scalar_lea.vmem %s2, %s29
        %v282 = vld [vmem:[%s281] sm:$0x1]
        %v284 = vlaneseq
        %v285 = vshrl.u32 %v284, 7
        %v286 = vsub.s32 0, %v285
        %v287 = vrot.slane %v282, %v286
        %v293 = vunpack.c.l.b16 %v277
        %v294 = vunpack.c.l.b16 %v278
        %v295 = vunpack.c.l.b16 %v279
        %v296 = vunpack.c.l.b16 %v280
        %v297 = vpack.c.b16 %v294, %v293
        %v298 = vpack.c.b16 %v296, %v295
        %vm301 = vcmask 261120
        %v303 = vsel %vm301, %v273, 0
        %305 = vmatprep.subr.bf16.mxu0 0
        %306 = vmatpush1.bf16.msra.mxu0 %v297
        %307 = vmatprep.subr.bf16.mxu0 0
        %308 = vmatpush1.bf16.msra.mxu0 %v298
        %309 = vmatprep.subr.bf16.mxu0 0
        %310 = vmatpush1.bf16.msra.mxu0 0
        %311 = vmatprep.subr.bf16.mxu0 0
        %312 = vmatpush1.bf16.msra.mxu0 0
        %313 = vmatprep.subr.bf16.mxu0 0
        %314 = vmatpush1.bf16.msra.mxu0 0
        %315 = vmatprep.subr.bf16.mxu0 0
        %316 = vmatpush1.bf16.msra.mxu0 0
        %317 = vmatprep.subr.bf16.mxu0 0
        %318 = vmatpush1.bf16.msra.mxu0 0
        %319 = vmatprep.subr.bf16.mxu0 0
        %320 = vmatpush1.bf16.msra.mxu0 0
        %321 = vmatprep.subr.bf16.mxu0 0
        %322 = vmatpush1.bf16.msra.mxu0 0
        %323 = vmatprep.subr.bf16.mxu0 0
        %324 = vmatpush1.bf16.msra.mxu0 0
        %325 = vmatprep.subr.bf16.mxu0 0
        %326 = vmatpush1.bf16.msra.mxu0 0
        %327 = vmatprep.subr.bf16.mxu0 0
        %328 = vmatpush1.bf16.msra.mxu0 0
        %329 = vmatprep.subr.bf16.mxu0 0
        %330 = vmatpush1.bf16.msra.mxu0 0
        %331 = vmatprep.subr.bf16.mxu0 0
        %332 = vmatpush1.bf16.msra.mxu0 0
        %333 = vmatprep.subr.bf16.mxu0 0
        %334 = vmatpush1.bf16.msra.mxu0 0
        %335 = vmatprep.subr.bf16.mxu0 0
        %336 = vmatpush1.bf16.msra.mxu0 0
        %337 = vmatprep.mubr.bf16.mxu0 0
        %338 = vmatmul.mubr.bf16.gmra.mrb[0].mxu0 %v303
        %v339 = vpop.f32.mrb[0].mxu0
        %v340 = vadd.f32 %v287, %v339
        %v341 = vpop.f32.mrb[0].mxu0
        %v342 = vpop.f32.mrb[0].mxu0
        %v343 = vpop.f32.mrb[0].mxu0
        %344 = vdwg.mxu0
        %s345 = smul.addr %s29, 4
        %s346 = scalar_lea.vmem %s3, %s345
        %v347 = vld [vmem:[%s346] sm:$0xf]
        %v348 = vpack.c.bf16 %v340, %v340
        %350 = vrot.lane.b32.xlu0 %v348, 120
        %v351 = vpop.permute.xlu0 %350
        %vm352 = vcmask 64512
        %v354 = vsel %vm352, %v348, 0
        %v357 = vsel %vm352, %v351, 0
        %359 = vmatprep.subr.bf16.mxu0 0
        %360 = vmatpush1.bf16.xpose.msra.mxu0 %v357
        %361 = vmatprep.subr.bf16.mxu0 0
        %362 = vmatpush1.bf16.xpose.msra.mxu0 0
        %363 = vmatprep.subr.bf16.mxu0 0
        %364 = vmatpush1.bf16.xpose.msra.mxu0 0
        %365 = vmatprep.subr.bf16.mxu0 0
        %366 = vmatpush1.bf16.xpose.msra.mxu0 0
        %367 = vmatprep.subr.bf16.mxu0 0
        %368 = vmatpush1.bf16.xpose.msra.mxu0 0
        %369 = vmatprep.subr.bf16.mxu0 0
        %370 = vmatpush1.bf16.xpose.msra.mxu0 0
        %371 = vmatprep.subr.bf16.mxu0 0
        %372 = vmatpush1.bf16.xpose.msra.mxu0 0
        %373 = vmatprep.subr.bf16.mxu0 0
        %374 = vmatpush1.bf16.xpose.msra.mxu0 0
        %375 = vmatprep.subr.bf16.mxu0 0
        %376 = vmatpush1.bf16.xpose.msra.mxu0 0
        %377 = vmatprep.subr.bf16.mxu0 0
        %378 = vmatpush1.bf16.xpose.msra.mxu0 0
        %379 = vmatprep.subr.bf16.mxu0 0
        %380 = vmatpush1.bf16.xpose.msra.mxu0 0
        %381 = vmatprep.subr.bf16.mxu0 0
        %382 = vmatpush1.bf16.xpose.msra.mxu0 0
        %383 = vmatprep.subr.bf16.mxu0 0
        %384 = vmatpush1.bf16.xpose.msra.mxu0 0
        %385 = vmatprep.subr.bf16.mxu0 0
        %386 = vmatpush1.bf16.xpose.msra.mxu0 0
        %387 = vmatprep.subr.bf16.mxu0 0
        %388 = vmatpush1.bf16.xpose.msra.mxu0 0
        %389 = vmatprep.subr.bf16.mxu0 0
        %390 = vmatpush1.bf16.xpose.msra.mxu0 0
        %391 = vmatprep.mubr.bf16.mxu0 0
        %392 = vmatmul.mubr.bf16.gmra.mrb[0].mxu0 %v354
        %v393 = vpop.f32.mrb[0].mxu0
        %v394 = vadd.f32 0.0, %v393
        %v395 = vpop.f32.mrb[0].mxu0
        %v396 = vpop.f32.mrb[0].mxu0
        %v397 = vpop.f32.mrb[0].mxu0
        %398 = vdwg.mxu0
        %v399 = vsel %vm352, %v394, -inf
        %400 = vmax.xlane.f32.xlu0 %v399
        %v401 = vpop.xlane.xlu0 %400
        %v402 = vsub.f32 %v394, %v401
        %v403 = vmul.f32 %v402, 1.442695
        %v404 = vpow.pop %v403
        %v405 = vsel %vm352, %v404, 0.0
        %406 = vadd.xlane.f32.xlu0 %v405
        %v407 = vpop.xlane.xlu0 %406
        %v408 = vrcp.pop %v407
        %v409 = vmul.f32 %v404, %v408
        %410 = vst.msk [vmem:[%s267] sm:$0xff] %vm352, %v409
        %v411 = vpack.c.bf16 %v409, %v409
        %412 = vrot.lane.b32.xlu0 %v348, 112
        %v413 = vpop.permute.xlu0 %412
        %v415 = vsel %vm352, %v411, 0
        %vm417 = vcmask 1043456
        %v419 = vsel %vm417, %v413, 0
        %421 = vmatprep.subr.bf16.mxu0 0
        %422 = vmatpush1.bf16.msra.mxu0 %v419
        %423 = vmatprep.subr.bf16.mxu0 0
        %424 = vmatpush1.bf16.msra.mxu0 0
        %425 = vmatprep.subr.bf16.mxu0 0
        %426 = vmatpush1.bf16.msra.mxu0 0
        %427 = vmatprep.subr.bf16.mxu0 0
        %428 = vmatpush1.bf16.msra.mxu0 0
        %429 = vmatprep.subr.bf16.mxu0 0
        %430 = vmatpush1.bf16.msra.mxu0 0
        %431 = vmatprep.subr.bf16.mxu0 0
        %432 = vmatpush1.bf16.msra.mxu0 0
        %433 = vmatprep.subr.bf16.mxu0 0
        %434 = vmatpush1.bf16.msra.mxu0 0
        %435 = vmatprep.subr.bf16.mxu0 0
        %436 = vmatpush1.bf16.msra.mxu0 0
        %437 = vmatprep.subr.bf16.mxu0 0
        %438 = vmatpush1.bf16.msra.mxu0 0
        %439 = vmatprep.subr.bf16.mxu0 0
        %440 = vmatpush1.bf16.msra.mxu0 0
        %441 = vmatprep.subr.bf16.mxu0 0
        %442 = vmatpush1.bf16.msra.mxu0 0
        %443 = vmatprep.subr.bf16.mxu0 0
        %444 = vmatpush1.bf16.msra.mxu0 0
        %445 = vmatprep.subr.bf16.mxu0 0
        %446 = vmatpush1.bf16.msra.mxu0 0
        %447 = vmatprep.subr.bf16.mxu0 0
        %448 = vmatpush1.bf16.msra.mxu0 0
        %449 = vmatprep.subr.bf16.mxu0 0
        %450 = vmatpush1.bf16.msra.mxu0 0
        %451 = vmatprep.subr.bf16.mxu0 0
        %452 = vmatpush1.bf16.msra.mxu0 0
        %453 = vmatprep.mubr.bf16.mxu0 0
        %454 = vmatmul.mubr.bf16.gmra.mrb[0].mxu0 %v415
        %v455 = vpop.f32.mrb[0].mxu0
        %v456 = vadd.f32 0.0, %v455
        %v457 = vpop.f32.mrb[0].mxu0
        %v458 = vpop.f32.mrb[0].mxu0
        %v459 = vpop.f32.mrb[0].mxu0
        %460 = vdwg.mxu0
        %v461 = vpack.c.bf16 %v456, %v456
        %v463 = vsel %vm352, %v461, 0
        %v466 = vsel %vm417, %v347, 0
        %468 = vmatprep.subr.bf16.mxu0 0
        %469 = vmatpush1.bf16.msra.mxu0 %v466
        %470 = vmatprep.subr.bf16.mxu0 0
        %471 = vmatpush1.bf16.msra.mxu0 0
        %472 = vmatprep.subr.bf16.mxu0 0
        %473 = vmatpush1.bf16.msra.mxu0 0
        %474 = vmatprep.subr.bf16.mxu0 0
        %475 = vmatpush1.bf16.msra.mxu0 0
        %476 = vmatprep.subr.bf16.mxu0 0
        %477 = vmatpush1.bf16.msra.mxu0 0
        %478 = vmatprep.subr.bf16.mxu0 0
        %479 = vmatpush1.bf16.msra.mxu0 0
        %480 = vmatprep.subr.bf16.mxu0 0
        %481 = vmatpush1.bf16.msra.mxu0 0
        %482 = vmatprep.subr.bf16.mxu0 0
        %483 = vmatpush1.bf16.msra.mxu0 0
        %484 = vmatprep.subr.bf16.mxu0 0
        %485 = vmatpush1.bf16.msra.mxu0 0
        %486 = vmatprep.subr.bf16.mxu0 0
        %487 = vmatpush1.bf16.msra.mxu0 0
        %488 = vmatprep.subr.bf16.mxu0 0
        %489 = vmatpush1.bf16.msra.mxu0 0
        %490 = vmatprep.subr.bf16.mxu0 0
        %491 = vmatpush1.bf16.msra.mxu0 0
        %492 = vmatprep.subr.bf16.mxu0 0
        %493 = vmatpush1.bf16.msra.mxu0 0
        %494 = vmatprep.subr.bf16.mxu0 0
        %495 = vmatpush1.bf16.msra.mxu0 0
        %496 = vmatprep.subr.bf16.mxu0 0
        %497 = vmatpush1.bf16.msra.mxu0 0
        %498 = vmatprep.subr.bf16.mxu0 0
        %499 = vmatpush1.bf16.msra.mxu0 0
        %500 = vmatprep.mubr.bf16.mxu0 0
        %501 = vmatmul.mubr.bf16.gmra.mrb[0].mxu0 %v463
        %v502 = vpop.f32.mrb[0].mxu0
        %v503 = vadd.f32 0.0, %v502
        %v504 = vpop.f32.mrb[0].mxu0
        %v505 = vpop.f32.mrb[0].mxu0
        %v506 = vpop.f32.mrb[0].mxu0
        %507 = vdwg.mxu0
        %p508 = scmp.eq.s32.totalorder %s29, 0
        // Predicated region
        $region41: #{tpu_custom_call.1} parent=39 // pred_check
          %p509 = pneg %p508
        $region42: #{tpu_custom_call.1} parent=39 // pred_check_branch
          %511 = sbr.rel (%p509) target = $region44
        $region43: #{tpu_custom_call.1} parent=39 // pred_region
          %v512 = vld [vmem:[%s4] sm:$0x1]
          %v514 = vlaneseq
          %v515 = vshrl.u32 %v514, 7
          %v516 = vsub.s32 0, %v515
          %v517 = vrot.slane %v512, %v516
          %v519 = vadd.f32 %v503, %v517
          %520 = vst.msk [vmem:[%s260] sm:$0xff] %vm301, %v519
        $region44: #{tpu_custom_call.1} parent=39 // pred_fallthru
          _
        %p521 = scmp.ne.s32.totalorder %s29, 0
        // Predicated region
        $region45: #{tpu_custom_call.1} parent=39 // pred_check
          %p522 = pneg %p521
        $region46: #{tpu_custom_call.1} parent=39 // pred_check_branch
          %524 = sbr.rel (%p522) target = $region48
        $region47: #{tpu_custom_call.1} parent=39 // pred_region
          %v525 = vld [vmem:[%s260] sm:$0xff]
          %v526 = vadd.f32 %v525, %v503
          %527 = vst.msk [vmem:[%s260] sm:$0xff] %vm301, %v526
        $region48: #{tpu_custom_call.1} parent=39 // pred_fallthru
          _
        %s528 = sand.u32 %s154, 1
        %s529 = scalar_lea.sflag [#allocation3], %s528
        %s530 = sand.u32 %s154, 1
        %s531 = smul.addr %s530, 8
        %s532 = scalar_lea.vmem [#allocation2], %s531
        %s533 = sand.u32 %s182, 1
        %s534 = scalar_lea.sflag [#allocation5], %s533
        %s535 = sand.u32 %s182, 1
        %s536 = smul.addr %s535, 8
        %s537 = scalar_lea.vmem [#allocation4], %s536
        // Predicated region
        $region49: #{tpu_custom_call.1} parent=39 // pred_check
          %p538 = pneg %p164
        $region50: #{tpu_custom_call.1} parent=39 // pred_check_branch
          %540 = sbr.rel (%p538) target = $region52
        $region51: #{tpu_custom_call.1} parent=39 // pred_region
          %s542 = ssub.s32 128, 128
          %543 = vsyncadd %s529, %s542
          %s544 = smul.addr %s28, 128
          %s545 = scalar_lea.hbm %s5, %s544
          %s547 = sshll.u32 %s532, 4
          %s548 = int_to_ptr.vmem [resolvable:$true] %s547
          %550 = dma.vmem_to_hbm [thread:$0]  %s548, 128, %s545, %s529
        $region52: #{tpu_custom_call.1} parent=39 // pred_fallthru
          _
        // Predicated region
        $region53: #{tpu_custom_call.1} parent=39 // pred_check
          %p551 = pneg %p192
        $region54: #{tpu_custom_call.1} parent=39 // pred_check_branch
          %553 = sbr.rel (%p551) target = $region56
        $region55: #{tpu_custom_call.1} parent=39 // pred_region
          %s555 = ssub.s32 128, 128
          %556 = vsyncadd %s534, %s555
          %s557 = smul.addr %s28, 4
          %s558 = sadd.s32 %s29, %s557
          %s559 = smul.addr %s558, 128
          %s560 = scalar_lea.hbm %s6, %s559
          %s562 = sshll.u32 %s537, 4
          %s563 = int_to_ptr.vmem [resolvable:$true] %s562
          %565 = dma.vmem_to_hbm [thread:$0]  %s563, 128, %s560, %s534
        $region56: #{tpu_custom_call.1} parent=39 // pred_fallthru
          _
      $region40: #{tpu_custom_call.1} parent=5 // pred_fallthru
        _
      %p566 = scmp.le.s32.totalorder 2, %s19
      // Predicated region
      $region57: #{tpu_custom_call.1} parent=5 // pred_check
        %p567 = pneg %p566
      $region58: #{tpu_custom_call.1} parent=5 // pred_check_branch
        %569 = sbr.rel (%p567) target = $region60
      $region59: #{tpu_custom_call.1} parent=5 // pred_region
        %s570 = ssub.s32 %s19, 2
        // Predicated region
        $region61: #{tpu_custom_call.1} parent=59 // pred_check
          %p571 = pneg %p170
        $region62: #{tpu_custom_call.1} parent=59 // pred_check_branch
          %573 = sbr.rel (%p571) target = $region64
        $region63: #{tpu_custom_call.1} parent=59 // pred_region
          %s574 = sand.u32 %s155, 1
          %s575 = scalar_lea.sflag [#allocation3], %s574
          %s576 = sand.u32 %s155, 1
          %s577 = smul.addr %s576, 8
          %s578 = scalar_lea.vmem [#allocation2], %s577
          %579 = dma.done %s575, 128
        $region64: #{tpu_custom_call.1} parent=59 // pred_fallthru
          _
        // Predicated region
        $region65: #{tpu_custom_call.1} parent=59 // pred_check
          %p580 = pneg %p198
        $region66: #{tpu_custom_call.1} parent=59 // pred_check_branch
          %582 = sbr.rel (%p580) target = $region68
        $region67: #{tpu_custom_call.1} parent=59 // pred_region
          %s583 = sand.u32 %s183, 1
          %s584 = scalar_lea.sflag [#allocation5], %s583
          %s585 = sand.u32 %s183, 1
          %s586 = smul.addr %s585, 8
          %s587 = scalar_lea.vmem [#allocation4], %s586
          %588 = dma.done %s584, 128
        $region68: #{tpu_custom_call.1} parent=59 // pred_fallthru
          _
      $region60: #{tpu_custom_call.1} parent=5 // pred_fallthru
        _
    $region6: #{tpu_custom_call.1} parent=1 // loop_footer
      %s23 = sadd.s32 1, %s19
    $region7: #{tpu_custom_call.1} parent=1 // loop_footer_branch
      %18 = sbr.rel target = $region3
    $region8: #{tpu_custom_call.1} parent=1 // loop_exit
      _
    %589 = vsyncpa [#allocation3], 1
    %s590 = scalar_lea.sflag [#allocation3], 1
    %591 = vsyncpa %s590, 1
    %592 = vsyncpa [#allocation5], 1
    %s593 = scalar_lea.sflag [#allocation5], 1
    %594 = vsyncpa %s593, 1

</llo_original>
